<compile_context>
chip_gen: v6e
topology: v6e:2x2x1
jax: 0.10.0
libtpu: 0.0.40
codegen_flags: <defaults>
</compile_context>

<pallas_src>
import functools

import jax
import jax.numpy as jnp
from jax.experimental import pallas as pl
from jax.experimental.pallas import tpu as pltpu


def _round_up(x, m):
    return -(-x // m) * m


def _hw_budget():
    """Returns (max bytes per input block, vmem_limit_bytes), per generation."""
    try:
        vmem = getattr(pltpu.get_tpu_info(), "vmem_capacity_bytes",
                       64 * 1024 * 1024)
    except Exception:  # unknown chip / emulator -> conservative settings
        vmem = 64 * 1024 * 1024
    if vmem >= 128 * 1024 * 1024:                 # v5e / v6e: 128 MiB physical
        return 4 * 1024 * 1024, 64 * 1024 * 1024
    return 2 * 1024 * 1024, 32 * 1024 * 1024      # v7x: 64 MiB per TensorCore


def _tiling(B, SF, F, itemsize):
    """Static tiling policy: lane pad, row-chunk, batch tile, batch pad."""
    # Lane padding to a multiple of 128 keeps DMAs lane-dense and the roll path
    # usable for any F.  Avoid the only wrap-ambiguous case (sf_pad == 2*feat).
    sf_pad = _round_up(max(SF, 128), 128)
    if sf_pad == 2 * F:
        sf_pad += 128
    row_bytes = sf_pad * itemsize

    # Rows per fori_loop iteration: keep each intermediate ~<= 16K elements so
    # the chunk lives in vregs (no spills).  Power-of-two multiple of 8.
    desired = max(8, min(64, 16384 // sf_pad))
    rows_chunk = 8
    for c in (64, 32, 16, 8):
        if c <= desired:
            rows_chunk = c
            break
    while rows_chunk > 8 and rows_chunk > _round_up(B, 8):
        rows_chunk //= 2                          # don't over-pad tiny batches
    sublane = {1: 32, 2: 16}.get(itemsize, 8)     # dtype-aware sublane tile
    align = max(rows_chunk, sublane)              # powers of two*8 -> max == lcm

    max_block_bytes, vmem_limit = _hw_budget()
    tb = max(align, (max_block_bytes // row_bytes) // align * align)
    b_aligned = _round_up(B, align)
    tb = min(tb, b_aligned)
    # Keep >= 2 grid blocks on sizeable problems so v7x's 2 TCs both get work.
    if b_aligned * row_bytes > (4 << 20):
        tb = min(tb, max(align, (b_aligned // 2) // align * align))
    b_pad = _round_up(B, tb)
    return sf_pad, rows_chunk, tb, b_pad, vmem_limit


def _penalty_partials_kernel(orig_ref, recon_ref, out_ref, *, feat, sf_valid,
                             threshold, rows_chunk, trip_count, unroll):
    """Per-block lane-wise partial sums.

    orig_ref / recon_ref : (TB, SF_PAD) lane-dense, zero-padded block.
    out_ref              : (1, 2, SF_PAD) -- row 0 = SSE lane partials,
                                             row 1 = penalty lane partials.
    """
    sf_pad = orig_ref.shape[1]

    # Validity mask for the lane-shifted temporal diff, computed ONCE per block
    # at (1, SF_PAD) and broadcast over sublanes in the loop below.
    # Roll-direction agnostic: a lane is valid iff its rolled partner is exactly
    # `feat` lanes away and both lane and partner lie inside the un-padded S*F
    # region (this also excludes wrapped lanes and pad lanes).
    lane = jax.lax.broadcasted_iota(jnp.int32, (1, sf_pad), 1)
    probe = pltpu.roll(lane, feat, axis=1)
    valid = jnp.logical_and(
        jnp.abs(lane - probe) == feat,
        jnp.logical_and(lane < sf_valid, probe < sf_valid),
    )

    def body(i, carry):
        sse_acc, pen_acc = carry
        start = pl.multiple_of(i * rows_chunk, rows_chunk)
        o = orig_ref[pl.ds(start, rows_chunk), :]
        r = recon_ref[pl.ds(start, rows_chunk), :]

        # --- MSE numerator: squared error accumulated in f32 ----------------
        d = r.astype(jnp.float32) - o.astype(jnp.float32)
        sse_acc = sse_acc + jnp.sum(d * d, axis=0, keepdims=True)

        # --- penalty: temporal diff == lane shift of `feat` -----------------
        # diff / abs / compare stay in the input dtype (native bf16 VALU on
        # v6e/v7x); only the accumulation is f32.
        od_abs = jnp.abs(o - pltpu.roll(o, feat, axis=1))
        rd_abs = jnp.abs(r - pltpu.roll(r, feat, axis=1))
        thr = jnp.asarray(threshold, dtype=od_abs.dtype)
        keep = jnp.logical_and(valid, od_abs < thr)
        contrib = jnp.where(keep, rd_abs, jnp.zeros_like(rd_abs))
        pen_acc = pen_acc + jnp.sum(contrib.astype(jnp.float32), axis=0,
                                    keepdims=True)
        return sse_acc, pen_acc

    init = (jnp.zeros((1, sf_pad), jnp.float32),
            jnp.zeros((1, sf_pad), jnp.float32))
    sse_acc, pen_acc = jax.lax.fori_loop(0, trip_count, body, init,
                                         unroll=unroll)

    # Direct lane-wise stores (no iota/where, no cross-lane reduction here).
    out_ref[:, 0:1, :] = sse_acc[None]
    out_ref[:, 1:2, :] = pen_acc[None]


@functools.partial(jax.jit, static_argnums=(2, 3))
def custom_penalty_loss(original, reconstructed, penalty_weight, threshold):
    assert original.shape == reconstructed.shape
    B, S, F = original.shape
    SF = S * F

    sf_pad, rows_chunk, tb, b_pad, vmem_limit = _tiling(
        B, SF, F, original.dtype.itemsize)
    num_blocks = b_pad // tb
    trip_count = tb // rows_chunk

    # Lane-dense view; zero-pad rows/lanes as needed.  Padding is inert:
    # zero rows add 0 to the SSE and 0 to the penalty (|0-0| recon diff),
    # and pad lanes are excluded by the in-kernel validity mask.
    o2 = original.reshape(B, SF)
    r2 = reconstructed.reshape(B, SF)
    if b_pad != B or sf_pad != SF:
        o2 = jnp.pad(o2, ((0, b_pad - B), (0, sf_pad - SF)))
        r2 = jnp.pad(r2, ((0, b_pad - B), (0, sf_pad - SF)))

    kernel = functools.partial(
        _penalty_partials_kernel,
        feat=F, sf_valid=SF, threshold=float(threshold),
        rows_chunk=rows_chunk, trip_count=trip_count,
        unroll=bool(trip_count <= 8),
    )

    partials = pl.pallas_call(
        kernel,
        out_shape=jax.ShapeDtypeStruct((num_blocks, 2, sf_pad), jnp.float32),
        grid=(num_blocks,),
        in_specs=[
            pl.BlockSpec((tb, sf_pad), lambda b: (b, 0)),
            pl.BlockSpec((tb, sf_pad), lambda b: (b, 0)),
        ],
        out_specs=pl.BlockSpec((1, 2, sf_pad), lambda b: (b, 0, 0)),
        compiler_params=pltpu.CompilerParams(
            # Each block writes its own output slot -> safe to shard across
            # TensorCores (v7x megacore); neutral on v5e/v6e.
            dimension_semantics=("parallel",),
            vmem_limit_bytes=vmem_limit,
        ),
    )(o2, r2)

    # Tiny cross-lane / cross-block reduction + combine in plain JAX.
    sse_total = jnp.sum(partials[:, 0, :])
    pen_total = jnp.sum(partials[:, 1, :])
    mse = sse_total / jnp.float32(B * S * F)
    return mse + jnp.float32(penalty_weight) * pen_total


def _reference(original, reconstructed, penalty_weight, threshold):
    o = original.astype(jnp.float32)
    r = reconstructed.astype(jnp.float32)
    mse = jnp.mean((r - o) ** 2)
    od = o[:, 1:] - o[:, :-1]
    rd = r[:, 1:] - r[:, :-1]
    mask = (jnp.abs(od) < threshold).astype(jnp.float32)
    pen = jnp.sum(mask * jnp.abs(rd)) * penalty_weight
    return mse + pen


if __name__ == "__main__":
    # Module "parameters".
    penalty_weight = 0.1
    threshold = 0.05

    # Small shapes consistent with a GRU autoencoder: (batch, seq, features).
    B, S, F = 2, 8, 32
    key = jax.random.PRNGKey(0)
    k1, k2 = jax.random.split(key)
    original = jax.random.normal(k1, (B, S, F), dtype=jnp.float32)
    reconstructed = original + 0.1 * jax.random.normal(k2, (B, S, F), dtype=jnp.float32)

    out = custom_penalty_loss(original, reconstructed, penalty_weight, threshold)
    out = jax.block_until_ready(out)

    ref = _reference(original, reconstructed, penalty_weight, threshold)
    assert jnp.allclose(out, ref, rtol=1e-5, atol=1e-5), (out, ref)

    print("KERNEL_OK")
</pallas_src>

<mosaic_0001>
module attributes {stable_mosaic.version = 11 : i64} {
  func.func @_penalty_partials_kernel(%arg0: i32, %arg1: memref<8x256xf32, #tpu.memory_space<vmem>>, %arg2: memref<8x256xf32, #tpu.memory_space<vmem>>, %arg3: memref<1x2x256xf32, #tpu.memory_space<vmem>>) attributes {dimension_semantics = [#tpu.dimension_semantics<parallel>], iteration_bounds = array<i64: 1>, scalar_prefetch = 0 : i64, scratch_operands = 0 : i64, tpu.core_type = #tpu.core_type<tc>, window_params = [{transform_indices = @transform_0, window_bounds = array<i64: 8, 256>}, {transform_indices = @transform_1, window_bounds = array<i64: 8, 256>}, {transform_indices = @transform_2, window_bounds = array<i64: 1, 2, 256>}]} {
    %0 = tpu.iota {dimensions = array<i32: 1>} : vector<1x256xi32>
    %c32_i32 = arith.constant 32 : i32
    %1 = tpu.dynamic_rotate %0 by %c32_i32 dim 1 : vector<1x256xi32>, i32 -> vector<1x256xi32>
    %2 = arith.subi %0, %1 : vector<1x256xi32>
    %3 = math.absi %2 : vector<1x256xi32>
    %c32_i32_0 = arith.constant 32 : i32
    %4 = vector.broadcast %c32_i32_0 : i32 to vector<1x256xi32>
    %5 = arith.cmpi eq, %3, %4 : vector<1x256xi32>
    %c256_i32 = arith.constant 256 : i32
    %6 = vector.broadcast %c256_i32 : i32 to vector<1x256xi32>
    %7 = arith.cmpi slt, %0, %6 : vector<1x256xi32>
    %c256_i32_1 = arith.constant 256 : i32
    %8 = vector.broadcast %c256_i32_1 : i32 to vector<1x256xi32>
    %9 = arith.cmpi slt, %1, %8 : vector<1x256xi32>
    %10 = arith.andi %7, %9 : vector<1x256xi1>
    %11 = arith.andi %5, %10 : vector<1x256xi1>
    %cst = arith.constant 0.000000e+00 : f32
    %12 = vector.broadcast %cst : f32 to vector<1x256xf32>
    %cst_2 = arith.constant 0.000000e+00 : f32
    %13 = vector.broadcast %cst_2 : f32 to vector<1x256xf32>
    %c0_i32 = arith.constant 0 : i32
    %c8_i32 = arith.constant 8 : i32
    %14 = arith.muli %c0_i32, %c8_i32 : i32
    %15 = tpu.assume_multiple %14, 8 : i32
    %16 = arith.index_cast %15 : i32 to index
    %c0 = arith.constant 0 : index
    %17 = vector.load %arg1[%16, %c0] : memref<8x256xf32, #tpu.memory_space<vmem>>, vector<8x256xf32>
    %18 = arith.index_cast %15 : i32 to index
    %c0_3 = arith.constant 0 : index
    %19 = vector.load %arg2[%18, %c0_3] : memref<8x256xf32, #tpu.memory_space<vmem>>, vector<8x256xf32>
    %20 = arith.subf %19, %17 : vector<8x256xf32>
    %21 = arith.mulf %20, %20 : vector<8x256xf32>
    %cst_4 = arith.constant dense<0.000000e+00> : vector<256xf32>
    %22 = vector.multi_reduction <add>, %21, %cst_4 [0] : vector<8x256xf32> to vector<256xf32>
    %23 = vector.shape_cast %22 : vector<256xf32> to vector<1x256xf32>
    %24 = arith.addf %12, %23 : vector<1x256xf32>
    %c32_i32_5 = arith.constant 32 : i32
    %25 = tpu.dynamic_rotate %17 by %c32_i32_5 dim 1 : vector<8x256xf32>, i32 -> vector<8x256xf32>
    %26 = arith.subf %17, %25 : vector<8x256xf32>
    %27 = math.absf %26 : vector<8x256xf32>
    %c32_i32_6 = arith.constant 32 : i32
    %28 = tpu.dynamic_rotate %19 by %c32_i32_6 dim 1 : vector<8x256xf32>, i32 -> vector<8x256xf32>
    %29 = arith.subf %19, %28 : vector<8x256xf32>
    %30 = math.absf %29 : vector<8x256xf32>
    %cst_7 = arith.constant 5.000000e-02 : f32
    %31 = vector.broadcast %cst_7 : f32 to vector<8x256xf32>
    %32 = arith.cmpf olt, %27, %31 : vector<8x256xf32>
    %33 = vector.broadcast %11 : vector<1x256xi1> to vector<8x256xi1>
    %34 = arith.andi %33, %32 : vector<8x256xi1>
    %cst_8 = arith.constant 0.000000e+00 : f32
    %35 = vector.broadcast %cst_8 : f32 to vector<8x256xf32>
    %36 = arith.select %34, %30, %35 : vector<8x256xi1>, vector<8x256xf32>
    %cst_9 = arith.constant dense<0.000000e+00> : vector<256xf32>
    %37 = vector.multi_reduction <add>, %36, %cst_9 [0] : vector<8x256xf32> to vector<256xf32>
    %38 = vector.shape_cast %37 : vector<256xf32> to vector<1x256xf32>
    %39 = arith.addf %13, %38 : vector<1x256xf32>
    %c1_i32 = arith.constant 1 : i32
    %40 = vector.shape_cast %24 : vector<1x256xf32> to vector<1x1x256xf32>
    %c0_10 = arith.constant 0 : index
    %c0_11 = arith.constant 0 : index
    %c0_12 = arith.constant 0 : index
    %41 = vector.load %arg3[%c0_10, %c0_11, %c0_12] : memref<1x2x256xf32, #tpu.memory_space<vmem>>, vector<1x1x256xf32>
    tpu.vector_store %arg3[%c0_10, %c0_11, %c0_12], %40 {strides = array<i32>} : memref<1x2x256xf32, #tpu.memory_space<vmem>>, vector<1x1x256xf32>,
    %42 = vector.shape_cast %39 : vector<1x256xf32> to vector<1x1x256xf32>
    %c0_13 = arith.constant 0 : index
    %c1 = arith.constant 1 : index
    %c0_14 = arith.constant 0 : index
    %43 = vector.load %arg3[%c0_13, %c1, %c0_14] : memref<1x2x256xf32, #tpu.memory_space<vmem>>, vector<1x1x256xf32>
    tpu.vector_store %arg3[%c0_13, %c1, %c0_14], %42 {strides = array<i32>} : memref<1x2x256xf32, #tpu.memory_space<vmem>>, vector<1x1x256xf32>,
    return
  }
  func.func @transform_0(%arg0: i32) -> (i32, i32) {
    %c0_i32 = arith.constant 0 : i32
    %c0_i32_0 = arith.constant 0 : i32
    return %arg0, %c0_i32 : i32, i32
  }
  func.func @transform_1(%arg0: i32) -> (i32, i32) {
    %c0_i32 = arith.constant 0 : i32
    %c0_i32_0 = arith.constant 0 : i32
    return %arg0, %c0_i32 : i32, i32
  }
  func.func @transform_2(%arg0: i32) -> (i32, i32, i32) {
    %c0_i32 = arith.constant 0 : i32
    %c0_i32_0 = arith.constant 0 : i32
    %c0_i32_1 = arith.constant 0 : i32
    return %arg0, %c0_i32, %c0_i32_0 : i32, i32, i32
  }
}

</mosaic_0001>

<llo_original>
// kernel: custom_penalty_loss.1
$region0: #{custom_penalty_loss.1}
  #allocation0 [shape = 'u32[]', space=smem, size = 0x4, offset = 0x4, fixed_abs, tag = 'smem constant byte address 0x4 - core index']
  #allocation1 [shape = 'u32[144,128]{1,0:T(1,128)}', space=vmem, size = 0x12000, scoped, tag = 'internal scratch']
  %s0 = inlined_call_operand.vmem [shape: f32[8,256], index: 0, kind: input, shape index: {}]
  %s1 = inlined_call_operand.vmem [shape: f32[8,256], index: 1, kind: input, shape index: {}]
  %s2 = inlined_call_operand.vmem [shape: f32[1,2,256], index: 2, kind: output, shape index: {}]
  %s3 = sld [smem:[#allocation0]]
  $region18: #{custom_penalty_loss.1} parent=0
    _
  %s5 = ssub.s32 1, %s3
  %s6 = scalar_select 0, %s5, %s3
  // Predicated region
  $region2: #{custom_penalty_loss.1} parent=0 // pred_check
    _
  $region3: #{custom_penalty_loss.1} parent=0 // pred_check_branch
    %8 = sbr.rel (0) target = $region5
  $region4: #{custom_penalty_loss.1} parent=0 // pred_region
    _
  $region5: #{custom_penalty_loss.1} parent=0 // pred_fallthru
    _
  // Predicated region
  $region6: #{custom_penalty_loss.1} parent=0 // pred_check
    _
  $region7: #{custom_penalty_loss.1} parent=0 // pred_check_branch
    %10 = sbr.rel (0) target = $region9
  $region8: #{custom_penalty_loss.1} parent=0 // pred_region
    _
  $region9: #{custom_penalty_loss.1} parent=0 // pred_fallthru
    _
  %v11 = vlaneseq
  %v12 = vand.u32 %v11, 127
  %v13 = vadd.s32 %v12, 128
  %14 = vrot.lane.b32.xlu0 %v12, 32
  %v15 = vpop.permute.xlu0 %14
  %16 = vrot.lane.b32.xlu0 %v13, 32
  %v17 = vpop.permute.xlu0 %16
  %vm18 = vcmp.lt.s32.totalorder %v12, 32
  %v19 = vsel %vm18, %v15, %v17
  %v20 = vsel %vm18, %v17, %v15
  %v21 = vsub.s32 %v12, %v20
  %v22 = vsub.s32 %v13, %v19
  %vm23 = vcmp.lt.s32.totalorder %v21, 0
  %v24 = vsub.s32 0, %v21
  %v25 = vsel %vm23, %v24, %v21
  %vm26 = vcmp.lt.s32.totalorder %v22, 0
  %v27 = vsub.s32 0, %v22
  %v28 = vsel %vm26, %v27, %v22
  %vm29 = vcmp.eq.s32.totalorder %v25, 32
  %vm30 = vcmp.eq.s32.totalorder %v28, 32
  %vm31 = vcmp.lt.s32.totalorder %v12, 256
  %vm32 = vcmp.lt.s32.totalorder %v13, 256
  %vm33 = vcmp.lt.s32.totalorder %v20, 256
  %vm34 = vcmp.lt.s32.totalorder %v19, 256
  %vm35 = vmand %vm31, %vm33
  %vm36 = vmand %vm32, %vm34
  %vm37 = vmand %vm29, %vm35
  %vm38 = vmand %vm30, %vm36
  %s39 = smul.u32 0, 2
  %s40 = smul.addr %s39, 8
  %s41 = scalar_lea.vmem %s0, %s40
  %v42 = vld [vmem:[%s41] sm:$0xff]
  %v43 = vld [vmem:[%s41 + $0x8] sm:$0xff]
  %s44 = smul.addr %s39, 8
  %s45 = scalar_lea.vmem %s1, %s44
  %v46 = vld [vmem:[%s45] sm:$0xff]
  %v47 = vld [vmem:[%s45 + $0x8] sm:$0xff]
  %v48 = vsub.f32 %v46, %v42
  %v49 = vsub.f32 %v47, %v43
  %v50 = vmul.f32 %v48, %v48
  %v51 = vmul.f32 %v49, %v49
  %v52 = vrot.slane %v50, 4
  %v53 = vadd.f32 %v50, %v52
  %v54 = vrot.slane %v53, 2
  %v55 = vadd.f32 %v53, %v54
  %v56 = vrot.slane %v55, 1
  %v57 = vadd.f32 %v55, %v56
  %v58 = vrot.slane %v51, 4
  %v59 = vadd.f32 %v51, %v58
  %v60 = vrot.slane %v59, 2
  %v61 = vadd.f32 %v59, %v60
  %v62 = vrot.slane %v61, 1
  %v63 = vadd.f32 %v61, %v62
  %v64 = vadd.f32 %v57, 0.0
  %v65 = vadd.f32 %v63, 0.0
  %66 = vrot.lane.b32.xlu0 %v42, 32
  %v67 = vpop.permute.xlu0 %66
  %68 = vrot.lane.b32.xlu0 %v43, 32
  %v69 = vpop.permute.xlu0 %68
  %v70 = vsel %vm18, %v67, %v69
  %v71 = vsel %vm18, %v69, %v67
  %v72 = vsub.f32 %v42, %v71
  %v73 = vsub.f32 %v43, %v70
  %v74 = vand.u32 2147483647, %v72
  %v75 = vand.u32 2147483647, %v73
  %76 = vrot.lane.b32.xlu0 %v46, 32
  %v77 = vpop.permute.xlu0 %76
  %78 = vrot.lane.b32.xlu0 %v47, 32
  %v79 = vpop.permute.xlu0 %78
  %v80 = vsel %vm18, %v77, %v79
  %v81 = vsel %vm18, %v79, %v77
  %v82 = vsub.f32 %v46, %v81
  %v83 = vsub.f32 %v47, %v80
  %v84 = vand.u32 2147483647, %v82
  %v85 = vand.u32 2147483647, %v83
  %vm86 = vcmp.lt.f32.partialorder %v74, 0.05
  %vm87 = vcmp.lt.f32.partialorder %v75, 0.05
  %v88 = vsel %vm37, 1, 0
  %v89 = vsel %vm38, 1, 0
  %v90 = vlaneseq
  %v91 = vshrl.u32 %v90, 7
  %v92 = vsub.s32 0, %v91
  %v93 = vrot.slane %v88, %v92
  %v94 = vlaneseq
  %v95 = vshrl.u32 %v94, 7
  %v96 = vsub.s32 0, %v95
  %v97 = vrot.slane %v89, %v96
  %vm98 = vcmp.eq.s32.totalorder %v93, 1
  %vm99 = vcmp.eq.s32.totalorder %v97, 1
  %vm100 = vmand %vm98, %vm86
  %vm101 = vmand %vm99, %vm87
  %v102 = vsel %vm100, %v84, 0.0
  %v103 = vsel %vm101, %v85, 0.0
  %v104 = vrot.slane %v102, 4
  %v105 = vadd.f32 %v102, %v104
  %v106 = vrot.slane %v105, 2
  %v107 = vadd.f32 %v105, %v106
  %v108 = vrot.slane %v107, 1
  %v109 = vadd.f32 %v107, %v108
  %v110 = vrot.slane %v103, 4
  %v111 = vadd.f32 %v103, %v110
  %v112 = vrot.slane %v111, 2
  %v113 = vadd.f32 %v111, %v112
  %v114 = vrot.slane %v113, 1
  %v115 = vadd.f32 %v113, %v114
  %v116 = vadd.f32 %v109, 0.0
  %v117 = vadd.f32 %v115, 0.0
  %v120 = vcombine.low %v64, %v65
  %v122 = vunpack.c.l.s4 1966171168
  %v123 = vunpack.c.0.s8 %v122
  %v124 = vlaneseq
  %v125 = vshrl.u32 %v124, 7
  %v126 = vsub.s32 %v123, %v125
  %v127 = vrot.slane %v120, %v126
  %v129 = vunpack.c.l.s4 1966171168
  %v130 = vunpack.c.0.s8 %v129
  %v131 = vlaneseq
  %v132 = vshrl.u32 %v131, 7
  %v133 = vsub.s32 %v130, %v132
  %v134 = vrot.slane %v127, %v133
  %v136 = vlaneseq
  %vm137 = vcmp.ge.s32.totalorder %v136, 0
  %vm138 = vcmp.lt.s32.totalorder %v136, 256
  %vm139 = vmand %vm137, %vm138
  %140 = vst.msk [vmem:[%s2] ss:$2 sm:$0x3] %vm139, %v134
  %v143 = vcombine.low %v116, %v117
  %v145 = vunpack.c.l.s4 1966171168
  %v146 = vunpack.c.0.s8 %v145
  %v147 = vlaneseq
  %v148 = vshrl.u32 %v147, 7
  %v149 = vsub.s32 %v146, %v148
  %v150 = vrot.slane %v143, %v149
  %v152 = vunpack.c.l.s4 1966171168
  %v153 = vunpack.c.0.s8 %v152
  %v154 = vlaneseq
  %v155 = vshrl.u32 %v154, 7
  %v156 = vsub.s32 %v153, %v155
  %v157 = vrot.slane %v150, %v156
  %s159 = scalar_lea.vmem %s2, 1
  %160 = vst.msk [vmem:[%s159] ss:$2 sm:$0x3] %vm139, %v157
  // Predicated region
  $region10: #{custom_penalty_loss.1} parent=0 // pred_check
    _
  $region11: #{custom_penalty_loss.1} parent=0 // pred_check_branch
    %162 = sbr.rel (0) target = $region13
  $region12: #{custom_penalty_loss.1} parent=0 // pred_region
    _
  $region13: #{custom_penalty_loss.1} parent=0 // pred_fallthru
    _
  // Predicated region
  $region14: #{custom_penalty_loss.1} parent=0 // pred_check
    _
  $region15: #{custom_penalty_loss.1} parent=0 // pred_check_branch
    %164 = sbr.rel (0) target = $region17
  $region16: #{custom_penalty_loss.1} parent=0 // pred_region
    _
  $region17: #{custom_penalty_loss.1} parent=0 // pred_fallthru
    _

</llo_original>
